<compile_context>
chip_gen: v7x
topology: tpu7x:2x2x1
jax: 0.10.0
libtpu: 0.0.40
codegen_flags: <defaults>
</compile_context>

<pallas_src>
import jax
import jax.numpy as jnp
from jax.experimental import pallas as pl
from jax.experimental.pallas import tpu as pltpu


def mlp_kernel_t(xt_ref, w1_ref, b1_ref, w2_ref, b2_ref, w3_ref, b3_ref, o_ref):
    """Batch-in-lanes MLP.  Columns of xt are samples.

    xt_ref: (inp, bm); W* in PyTorch (out, in) storage; b* as (out, 1) columns;
    o_ref: (outp, bm).  All dots accumulate in f32 on the MXU.
    """
    xt = xt_ref[...]
    # fc1 + ReLU
    h1 = jnp.dot(w1_ref[...], xt, preferred_element_type=jnp.float32)
    h1 = jnp.maximum(h1 + b1_ref[...], 0.0)
    # fc2 + ReLU
    h2 = jnp.dot(w2_ref[...], h1.astype(w2_ref.dtype),
                 preferred_element_type=jnp.float32)
    h2 = jnp.maximum(h2 + b2_ref[...], 0.0)
    # fc3 (no activation)
    h3 = jnp.dot(w3_ref[...], h2.astype(w3_ref.dtype),
                 preferred_element_type=jnp.float32)
    o_ref[...] = (h3 + b3_ref[...]).astype(o_ref.dtype)


def _num_tensorcores():
    """Best-effort TensorCore count per chip (v7x=2, v5e/v6e=1)."""
    try:
        kind = jax.devices()[0].device_kind.lower()
        if "v7" in kind:
            return 2
    except Exception:
        pass
    return 1


def _choose_block_m(batch, block_m, num_cores):
    """Row (lane) tile for the batch axis.

    Large for per-step-overhead amortization; multiple of 128 whenever it does
    not cover the whole batch.  Only multi-TC chips (v7x) get capped so the
    grid keeps >= num_cores steps for cross-core sharding.
    """
    bm = min(block_m, batch)
    if bm < batch:
        bm = max(128, (bm // 128) * 128)
        if bm >= batch:
            bm = batch
    if num_cores > 1 and batch >= num_cores * 128:
        per_core = (batch // num_cores // 128) * 128
        if per_core >= 128:
            bm = min(bm, per_core)
    return bm


def prepare_params(params, *, compute_dtype=jnp.float32):
    """One-time param prep, hoisted out of the per-call hot path.

    Weights stay in PyTorch (out, in) storage -- the batch-in-lanes kernel uses
    them directly.  Biases become (out, 1) f32 columns that broadcast across
    the lane (batch) axis.  compute_dtype=jnp.bfloat16 halves x/W HBM traffic
    on v6e/v7x (looser tolerance vs. the f32 reference); keep f32 on v5e.
    """
    return {
        "w1": params["w1"].astype(compute_dtype),
        "w2": params["w2"].astype(compute_dtype),
        "w3": params["w3"].astype(compute_dtype),
        "b1": params["b1"].astype(jnp.float32)[:, None],
        "b2": params["b2"].astype(jnp.float32)[:, None],
        "b3": params["b3"].astype(jnp.float32)[:, None],
    }


def dnn_forward_t(xt, p, *, block_m=4096, num_tensorcores=None):
    """Run the kernel on x^T of shape (inp, B); returns (outp, B) float32."""
    inp, B = xt.shape
    outp = p["w3"].shape[0]
    if num_tensorcores is None:
        num_tensorcores = _num_tensorcores()
    bm = _choose_block_m(B, block_m, num_tensorcores)
    grid = (pl.cdiv(B, bm),)

    return pl.pallas_call(
        mlp_kernel_t,
        out_shape=jax.ShapeDtypeStruct((outp, B), jnp.float32),
        grid=grid,
        in_specs=[
            pl.BlockSpec((inp, bm), lambda i: (0, i)),       # x^T tile (streams)
            pl.BlockSpec(p["w1"].shape, lambda i: (0, 0)),   # W1 (VMEM-resident)
            pl.BlockSpec(p["b1"].shape, lambda i: (0, 0)),   # b1
            pl.BlockSpec(p["w2"].shape, lambda i: (0, 0)),   # W2
            pl.BlockSpec(p["b2"].shape, lambda i: (0, 0)),   # b2
            pl.BlockSpec(p["w3"].shape, lambda i: (0, 0)),   # W3
            pl.BlockSpec(p["b3"].shape, lambda i: (0, 0)),   # b3
        ],
        out_specs=pl.BlockSpec((outp, bm), lambda i: (0, i)),
        compiler_params=pltpu.CompilerParams(
            dimension_semantics=("parallel",),
        ),
    )(xt, p["w1"], p["b1"], p["w2"], p["b2"], p["w3"], p["b3"])


def dnn_forward(x, prepared_params, *, block_m=4096, num_tensorcores=None):
    """x: (B, inp) in the PyTorch nn.Linear layout.  Returns (B, outp).

    The wrapper does a one-time transpose to/from the batch-in-lanes layout so
    the kernel sees lane-dense input, output, and MXU operands.
    """
    xt = x.T.astype(prepared_params["w1"].dtype)
    out_t = dnn_forward_t(xt, prepared_params, block_m=block_m,
                          num_tensorcores=num_tensorcores)
    return out_t.T.astype(x.dtype)


def init_params(key, inp, outp):
    """Deterministic synthetic params, PyTorch Linear storage convention (out, in)."""
    ks = jax.random.split(key, 6)
    scale = 0.1
    return {
        "w1": scale * jax.random.normal(ks[0], (64, inp), jnp.float32),
        "b1": scale * jax.random.normal(ks[1], (64,), jnp.float32),
        "w2": scale * jax.random.normal(ks[2], (32, 64), jnp.float32),
        "b2": scale * jax.random.normal(ks[3], (32,), jnp.float32),
        "w3": scale * jax.random.normal(ks[4], (outp, 32), jnp.float32),
        "b3": scale * jax.random.normal(ks[5], (outp,), jnp.float32),
    }


def dnn_reference(x, p):
    h = jnp.maximum(x @ p["w1"].T + p["b1"], 0.0)
    h = jnp.maximum(h @ p["w2"].T + p["b2"], 0.0)
    return h @ p["w3"].T + p["b3"]


if __name__ == "__main__":
    key = jax.random.PRNGKey(0)
    k_x, k_p = jax.random.split(key)

    batch, inp, outp = 256, 32, 16
    x = jax.random.normal(k_x, (batch, inp), jnp.float32)
    params = init_params(k_p, inp, outp)
    prepared = prepare_params(params)          # f32 path (bf16 via compute_dtype=)

    out = jax.block_until_ready(dnn_forward(x, prepared))
    ref = dnn_reference(x, params)
    assert out.shape == (batch, outp), out.shape
    assert jnp.allclose(out, ref, atol=1e-5, rtol=1e-5), "mismatch vs reference"

    # Uneven, larger batch: multi-step grid with a partial last tile.
    batch2 = 1000
    x2 = jax.random.normal(jax.random.PRNGKey(1), (batch2, inp), jnp.float32)
    out2 = jax.block_until_ready(dnn_forward(x2, prepared, block_m=512))
    ref2 = dnn_reference(x2, params)
    assert out2.shape == (batch2, outp), out2.shape
    assert jnp.allclose(out2, ref2, atol=1e-5, rtol=1e-5), \
        "mismatch vs reference (uneven batch)"

    print("KERNEL_OK")
</pallas_src>

<mosaic_0001>
module attributes {stable_mosaic.version = 11 : i64} {
  func.func @mlp_kernel_t(%arg0: i32, %arg1: memref<32x256xf32, #tpu.memory_space<vmem>>, %arg2: memref<64x32xf32, #tpu.memory_space<vmem>>, %arg3: memref<64x1xf32, #tpu.memory_space<vmem>>, %arg4: memref<32x64xf32, #tpu.memory_space<vmem>>, %arg5: memref<32x1xf32, #tpu.memory_space<vmem>>, %arg6: memref<16x32xf32, #tpu.memory_space<vmem>>, %arg7: memref<16x1xf32, #tpu.memory_space<vmem>>, %arg8: memref<16x256xf32, #tpu.memory_space<vmem>>) attributes {dimension_semantics = [#tpu.dimension_semantics<parallel>], iteration_bounds = array<i64: 1>, scalar_prefetch = 0 : i64, scratch_operands = 0 : i64, tpu.core_type = #tpu.core_type<tc>, window_params = [{transform_indices = @transform_0, window_bounds = array<i64: 32, 256>}, {pipeline_mode = #tpu.pipeline_mode<synchronous>, transform_indices = @transform_1, window_bounds = array<i64: 64, 32>}, {pipeline_mode = #tpu.pipeline_mode<synchronous>, transform_indices = @transform_2, window_bounds = array<i64: 64, 1>}, {pipeline_mode = #tpu.pipeline_mode<synchronous>, transform_indices = @transform_3, window_bounds = array<i64: 32, 64>}, {pipeline_mode = #tpu.pipeline_mode<synchronous>, transform_indices = @transform_4, window_bounds = array<i64: 32, 1>}, {pipeline_mode = #tpu.pipeline_mode<synchronous>, transform_indices = @transform_5, window_bounds = array<i64: 16, 32>}, {pipeline_mode = #tpu.pipeline_mode<synchronous>, transform_indices = @transform_6, window_bounds = array<i64: 16, 1>}, {transform_indices = @transform_7, window_bounds = array<i64: 16, 256>}]} {
    %c0 = arith.constant 0 : index
    %c0_0 = arith.constant 0 : index
    %0 = vector.load %arg1[%c0, %c0_0] : memref<32x256xf32, #tpu.memory_space<vmem>>, vector<32x256xf32>
    %c0_1 = arith.constant 0 : index
    %c0_2 = arith.constant 0 : index
    %1 = vector.load %arg2[%c0_1, %c0_2] : memref<64x32xf32, #tpu.memory_space<vmem>>, vector<64x32xf32>
    %cst = arith.constant dense<0.000000e+00> : vector<64x256xf32>
    %2 = tpu.matmul %1, %0, %cst {dimension_numbers = #tpu.dot_dimension_numbers<[1], [0], [0], [1], [0, 0, 1, 1], [], []>} : vector<64x32xf32>, vector<32x256xf32>, vector<64x256xf32> -> vector<64x256xf32>
    %c0_3 = arith.constant 0 : index
    %c0_4 = arith.constant 0 : index
    %3 = vector.load %arg3[%c0_3, %c0_4] : memref<64x1xf32, #tpu.memory_space<vmem>>, vector<64x1xf32>
    %4 = vector.broadcast %3 : vector<64x1xf32> to vector<64x256xf32>
    %5 = arith.addf %2, %4 : vector<64x256xf32>
    %cst_5 = arith.constant 0.000000e+00 : f32
    %6 = vector.broadcast %cst_5 : f32 to vector<64x256xf32>
    %7 = arith.maximumf %5, %6 : vector<64x256xf32>
    %c0_6 = arith.constant 0 : index
    %c0_7 = arith.constant 0 : index
    %8 = vector.load %arg4[%c0_6, %c0_7] : memref<32x64xf32, #tpu.memory_space<vmem>>, vector<32x64xf32>
    %cst_8 = arith.constant dense<0.000000e+00> : vector<32x256xf32>
    %9 = tpu.matmul %8, %7, %cst_8 {dimension_numbers = #tpu.dot_dimension_numbers<[1], [0], [0], [1], [0, 0, 1, 1], [], []>} : vector<32x64xf32>, vector<64x256xf32>, vector<32x256xf32> -> vector<32x256xf32>
    %c0_9 = arith.constant 0 : index
    %c0_10 = arith.constant 0 : index
    %10 = vector.load %arg5[%c0_9, %c0_10] : memref<32x1xf32, #tpu.memory_space<vmem>>, vector<32x1xf32>
    %11 = vector.broadcast %10 : vector<32x1xf32> to vector<32x256xf32>
    %12 = arith.addf %9, %11 : vector<32x256xf32>
    %cst_11 = arith.constant 0.000000e+00 : f32
    %13 = vector.broadcast %cst_11 : f32 to vector<32x256xf32>
    %14 = arith.maximumf %12, %13 : vector<32x256xf32>
    %c0_12 = arith.constant 0 : index
    %c0_13 = arith.constant 0 : index
    %15 = vector.load %arg6[%c0_12, %c0_13] : memref<16x32xf32, #tpu.memory_space<vmem>>, vector<16x32xf32>
    %cst_14 = arith.constant dense<0.000000e+00> : vector<16x256xf32>
    %16 = tpu.matmul %15, %14, %cst_14 {dimension_numbers = #tpu.dot_dimension_numbers<[1], [0], [0], [1], [0, 0, 1, 1], [], []>} : vector<16x32xf32>, vector<32x256xf32>, vector<16x256xf32> -> vector<16x256xf32>
    %c0_15 = arith.constant 0 : index
    %c0_16 = arith.constant 0 : index
    %17 = vector.load %arg7[%c0_15, %c0_16] : memref<16x1xf32, #tpu.memory_space<vmem>>, vector<16x1xf32>
    %18 = vector.broadcast %17 : vector<16x1xf32> to vector<16x256xf32>
    %19 = arith.addf %16, %18 : vector<16x256xf32>
    %c0_17 = arith.constant 0 : index
    %c0_18 = arith.constant 0 : index
    %20 = vector.load %arg8[%c0_17, %c0_18] : memref<16x256xf32, #tpu.memory_space<vmem>>, vector<16x256xf32>
    tpu.vector_store %arg8[%c0_17, %c0_18], %19 {strides = array<i32>} : memref<16x256xf32, #tpu.memory_space<vmem>>, vector<16x256xf32>,
    return
  }
  func.func @transform_0(%arg0: i32) -> (i32, i32) {
    %c0_i32 = arith.constant 0 : i32
    %c0_i32_0 = arith.constant 0 : i32
    return %c0_i32, %arg0 : i32, i32
  }
  func.func @transform_1(%arg0: i32) -> (i32, i32) {
    %c0_i32 = arith.constant 0 : i32
    %c0_i32_0 = arith.constant 0 : i32
    %c0_i32_1 = arith.constant 0 : i32
    return %c0_i32, %c0_i32_0 : i32, i32
  }
  func.func @transform_2(%arg0: i32) -> (i32, i32) {
    %c0_i32 = arith.constant 0 : i32
    %c0_i32_0 = arith.constant 0 : i32
    %c0_i32_1 = arith.constant 0 : i32
    return %c0_i32, %c0_i32_0 : i32, i32
  }
  func.func @transform_3(%arg0: i32) -> (i32, i32) {
    %c0_i32 = arith.constant 0 : i32
    %c0_i32_0 = arith.constant 0 : i32
    %c0_i32_1 = arith.constant 0 : i32
    return %c0_i32, %c0_i32_0 : i32, i32
  }
  func.func @transform_4(%arg0: i32) -> (i32, i32) {
    %c0_i32 = arith.constant 0 : i32
    %c0_i32_0 = arith.constant 0 : i32
    %c0_i32_1 = arith.constant 0 : i32
    return %c0_i32, %c0_i32_0 : i32, i32
  }
  func.func @transform_5(%arg0: i32) -> (i32, i32) {
    %c0_i32 = arith.constant 0 : i32
    %c0_i32_0 = arith.constant 0 : i32
    %c0_i32_1 = arith.constant 0 : i32
    return %c0_i32, %c0_i32_0 : i32, i32
  }
  func.func @transform_6(%arg0: i32) -> (i32, i32) {
    %c0_i32 = arith.constant 0 : i32
    %c0_i32_0 = arith.constant 0 : i32
    %c0_i32_1 = arith.constant 0 : i32
    return %c0_i32, %c0_i32_0 : i32, i32
  }
  func.func @transform_7(%arg0: i32) -> (i32, i32) {
    %c0_i32 = arith.constant 0 : i32
    %c0_i32_0 = arith.constant 0 : i32
    return %c0_i32, %arg0 : i32, i32
  }
}

</mosaic_0001>

<llo_original>
// kernel: tpu_custom_call.1
$region0: #{tpu_custom_call.1}
  #allocation0 [shape = 'u32[]', space=smem, size = 0x4, offset = 0x4, fixed_abs, tag = 'smem constant byte address 0x4 - core index']
  #allocation1 [shape = 'u32[144,128]{1,0:T(1,128)}', space=vmem, size = 0x12000, scoped, tag = 'internal scratch']
  %s0 = inlined_call_operand.vmem [shape: f32[32,256], index: 0, kind: input, shape index: {}]
  %s1 = inlined_call_operand.vmem [shape: f32[64,32], index: 1, kind: input, shape index: {}]
  %s2 = inlined_call_operand.vmem [shape: f32[64,1], index: 2, kind: input, shape index: {}]
  %s3 = inlined_call_operand.vmem [shape: f32[32,64], index: 3, kind: input, shape index: {}]
  %s4 = inlined_call_operand.vmem [shape: f32[32,1], index: 4, kind: input, shape index: {}]
  %s5 = inlined_call_operand.vmem [shape: f32[16,32], index: 5, kind: input, shape index: {}]
  %s6 = inlined_call_operand.vmem [shape: f32[16,1], index: 6, kind: input, shape index: {}]
  %s7 = inlined_call_operand.hbm [shape: f32[16,256], index: 7, kind: output, shape index: {}]
  %s8 = sld [smem:[#allocation0]]
  $region38: #{tpu_custom_call.1} parent=0
    _
  %s10 = ssub.s32 1, %s8
  %s11 = scalar_select 0, %s10, %s8
  $region1: #{tpu_custom_call.1} parent=0
    #allocation2 [shape = 'u8[16384]{0}', space=vmem, size = 0x4000, scoped, tag = 'output window, operand 0, single buffered']
    #allocation3 [shape = 's32[1]{0}', space=sflag, size = 0x4, scoped, tag = 'scoped memory for tpu_custom_call.1']
    %12 = vsyncpa [#allocation3], 0
    // Predicated region
    $region2: #{tpu_custom_call.1} parent=1 // pred_check
      _
    $region3: #{tpu_custom_call.1} parent=1 // pred_check_branch
      %14 = sbr.rel (0) target = $region5
    $region4: #{tpu_custom_call.1} parent=1 // pred_region
      _
    $region5: #{tpu_custom_call.1} parent=1 // pred_fallthru
      _
    // Predicated region
    $region6: #{tpu_custom_call.1} parent=1 // pred_check
      _
    $region7: #{tpu_custom_call.1} parent=1 // pred_check_branch
      %16 = sbr.rel (0) target = $region9
    $region8: #{tpu_custom_call.1} parent=1 // pred_region
      _
    $region9: #{tpu_custom_call.1} parent=1 // pred_fallthru
      _
    // Predicated region
    $region10: #{tpu_custom_call.1} parent=1 // pred_check
      _
    $region11: #{tpu_custom_call.1} parent=1 // pred_check_branch
      %18 = sbr.rel (0) target = $region13
    $region12: #{tpu_custom_call.1} parent=1 // pred_region
      _
    $region13: #{tpu_custom_call.1} parent=1 // pred_fallthru
      _
    // Predicated region
    $region14: #{tpu_custom_call.1} parent=1 // pred_check
      _
    $region15: #{tpu_custom_call.1} parent=1 // pred_check_branch
      %20 = sbr.rel (0) target = $region17
    $region16: #{tpu_custom_call.1} parent=1 // pred_region
      _
    $region17: #{tpu_custom_call.1} parent=1 // pred_fallthru
      _
    // Predicated region
    $region18: #{tpu_custom_call.1} parent=1 // pred_check
      _
    $region19: #{tpu_custom_call.1} parent=1 // pred_check_branch
      %22 = sbr.rel (0) target = $region21
    $region20: #{tpu_custom_call.1} parent=1 // pred_region
      _
    $region21: #{tpu_custom_call.1} parent=1 // pred_fallthru
      _
    // Predicated region
    $region22: #{tpu_custom_call.1} parent=1 // pred_check
      _
    $region23: #{tpu_custom_call.1} parent=1 // pred_check_branch
      %24 = sbr.rel (0) target = $region25
    $region24: #{tpu_custom_call.1} parent=1 // pred_region
      _
    $region25: #{tpu_custom_call.1} parent=1 // pred_fallthru
      _
    // Predicated region
    $region26: #{tpu_custom_call.1} parent=1 // pred_check
      _
    $region27: #{tpu_custom_call.1} parent=1 // pred_check_branch
      %26 = sbr.rel (0) target = $region29
    $region28: #{tpu_custom_call.1} parent=1 // pred_region
      _
    $region29: #{tpu_custom_call.1} parent=1 // pred_fallthru
      _
    %v27 = vld [vmem:[%s0] sm:$0xff]
    %v28 = vld [vmem:[%s0 + $0x8] sm:$0xff]
    %v29 = vld [vmem:[%s0 + $0x10] sm:$0xff]
    %v30 = vld [vmem:[%s0 + $0x18] sm:$0xff]
    %v31 = vld [vmem:[%s0 + $0x20] sm:$0xff]
    %v32 = vld [vmem:[%s0 + $0x28] sm:$0xff]
    %v33 = vld [vmem:[%s0 + $0x30] sm:$0xff]
    %v34 = vld [vmem:[%s0 + $0x38] sm:$0xff]
    %v35 = vld [vmem:[%s1] sm:$0xff]
    %v36 = vld [vmem:[%s1 + $0x8] sm:$0xff]
    %v37 = vld [vmem:[%s1 + $0x10] sm:$0xff]
    %v38 = vld [vmem:[%s1 + $0x18] sm:$0xff]
    %v39 = vld [vmem:[%s1 + $0x20] sm:$0xff]
    %v40 = vld [vmem:[%s1 + $0x28] sm:$0xff]
    %v41 = vld [vmem:[%s1 + $0x30] sm:$0xff]
    %v42 = vld [vmem:[%s1 + $0x38] sm:$0xff]
    %v43 = vld [vmem:[%s2] sm:$0xff]
    %v44 = vld [vmem:[%s2 + $0x8] sm:$0xff]
    %v45 = vld [vmem:[%s2 + $0x10] sm:$0xff]
    %v46 = vld [vmem:[%s2 + $0x18] sm:$0xff]
    %v47 = vld [vmem:[%s2 + $0x20] sm:$0xff]
    %v48 = vld [vmem:[%s2 + $0x28] sm:$0xff]
    %v49 = vld [vmem:[%s2 + $0x30] sm:$0xff]
    %v50 = vld [vmem:[%s2 + $0x38] sm:$0xff]
    %52 = vset.pattern.permute.xlu0 0
    %53 = vperm.xlu0 %52, %v43
    %v54 = vpop.permute.xlu0 %53
    %57 = vset.pattern.permute.xlu0 0
    %58 = vperm.xlu0 %57, %v44
    %v59 = vpop.permute.xlu0 %58
    %62 = vset.pattern.permute.xlu0 0
    %63 = vperm.xlu0 %62, %v45
    %v64 = vpop.permute.xlu0 %63
    %67 = vset.pattern.permute.xlu0 0
    %68 = vperm.xlu0 %67, %v46
    %v69 = vpop.permute.xlu0 %68
    %72 = vset.pattern.permute.xlu0 0
    %73 = vperm.xlu0 %72, %v47
    %v74 = vpop.permute.xlu0 %73
    %77 = vset.pattern.permute.xlu0 0
    %78 = vperm.xlu0 %77, %v48
    %v79 = vpop.permute.xlu0 %78
    %82 = vset.pattern.permute.xlu0 0
    %83 = vperm.xlu0 %82, %v49
    %v84 = vpop.permute.xlu0 %83
    %87 = vset.pattern.permute.xlu0 0
    %88 = vperm.xlu0 %87, %v50
    %v89 = vpop.permute.xlu0 %88
    %vm91 = vcmask 261120
    %v93 = vsel %vm91, %v35, 0
    %v96 = vsel %vm91, %v36, 0
    %v99 = vsel %vm91, %v37, 0
    %v102 = vsel %vm91, %v38, 0
    %v105 = vsel %vm91, %v39, 0
    %v108 = vsel %vm91, %v40, 0
    %v111 = vsel %vm91, %v41, 0
    %v114 = vsel %vm91, %v42, 0
    %116 = vmatprep.subr.mxu0 %v28
    %117 = vmatpush1.msra.mxu0 %v27
    %118 = vmatprep.subr.mxu0 %v30
    %119 = vmatpush1.msra.mxu0 %v29
    %120 = vmatprep.subr.mxu0 %v32
    %121 = vmatpush1.msra.mxu0 %v31
    %122 = vmatprep.subr.mxu0 %v34
    %123 = vmatpush1.msra.mxu0 %v33
    %124 = vmatprep.subr.mxu0 0.0
    %125 = vmatpush1.msra.mxu0 0.0
    %126 = vmatprep.subr.mxu0 0.0
    %127 = vmatpush1.msra.mxu0 0.0
    %128 = vmatprep.subr.mxu0 0.0
    %129 = vmatpush1.msra.mxu0 0.0
    %130 = vmatprep.subr.mxu0 0.0
    %131 = vmatpush1.msra.mxu0 0.0
    %132 = vmatprep.subr.mxu0 0.0
    %133 = vmatpush1.msra.mxu0 0.0
    %134 = vmatprep.subr.mxu0 0.0
    %135 = vmatpush1.msra.mxu0 0.0
    %136 = vmatprep.subr.mxu0 0.0
    %137 = vmatpush1.msra.mxu0 0.0
    %138 = vmatprep.subr.mxu0 0.0
    %139 = vmatpush1.msra.mxu0 0.0
    %140 = vmatprep.subr.mxu0 0.0
    %141 = vmatpush1.msra.mxu0 0.0
    %142 = vmatprep.subr.mxu0 0.0
    %143 = vmatpush1.msra.mxu0 0.0
    %144 = vmatprep.subr.mxu0 0.0
    %145 = vmatpush1.msra.mxu0 0.0
    %146 = vmatprep.subr.mxu0 0.0
    %147 = vmatpush1.msra.mxu0 0.0
    %148 = vmatprep.subr.mxu0 0.0
    %149 = vmatpush1.msra.mxu0 0.0
    %150 = vmatprep.subr.mxu0 0.0
    %151 = vmatpush1.msra.mxu0 0.0
    %152 = vmatprep.subr.mxu0 0.0
    %153 = vmatpush1.msra.mxu0 0.0
    %154 = vmatprep.subr.mxu0 0.0
    %155 = vmatpush1.msra.mxu0 0.0
    %156 = vmatprep.subr.mxu0 0.0
    %157 = vmatpush1.msra.mxu0 0.0
    %158 = vmatprep.subr.mxu0 0.0
    %159 = vmatpush1.msra.mxu0 0.0
    %160 = vmatprep.subr.mxu0 0.0
    %161 = vmatpush1.msra.mxu0 0.0
    %162 = vmatprep.subr.mxu0 0.0
    %163 = vmatpush1.msra.mxu0 0.0
    %164 = vmatprep.subr.mxu0 0.0
    %165 = vmatpush1.msra.mxu0 0.0
    %166 = vmatprep.subr.mxu0 0.0
    %167 = vmatpush1.msra.mxu0 0.0
    %168 = vmatprep.subr.mxu0 0.0
    %169 = vmatpush1.msra.mxu0 0.0
    %170 = vmatprep.subr.mxu0 0.0
    %171 = vmatpush1.msra.mxu0 0.0
    %172 = vmatprep.subr.mxu0 0.0
    %173 = vmatpush1.msra.mxu0 0.0
    %174 = vmatprep.subr.mxu0 0.0
    %175 = vmatpush1.msra.mxu0 0.0
    %176 = vmatprep.subr.mxu0 0.0
    %177 = vmatpush1.msra.mxu0 0.0
    %178 = vmatprep.subr.mxu0 0.0
    %179 = vmatpush1.msra.mxu0 0.0
    %180 = vmatprep.mubr.f32.mxu0 0.0
    %181 = vmatmul.mubr.f32.gmra.mrb[0].mxu0 %v93
    %v182 = vpop.f32.mrb[0].mxu0
    %v183 = vadd.f32 %v54, %v182
    %v184 = vpop.f32.mrb[0].mxu0
    %v185 = vadd.f32 %v54, %v184
    %186 = vmatprep.mubr.f32.mxu0 0.0
    %187 = vmatmul.mubr.f32.gmra.mrb[0].mxu0 %v96
    %v188 = vpop.f32.mrb[0].mxu0
    %v189 = vadd.f32 %v59, %v188
    %v190 = vpop.f32.mrb[0].mxu0
    %v191 = vadd.f32 %v59, %v190
    %192 = vmatprep.mubr.f32.mxu0 0.0
    %193 = vmatmul.mubr.f32.gmra.mrb[0].mxu0 %v99
    %v194 = vpop.f32.mrb[0].mxu0
    %v195 = vadd.f32 %v64, %v194
    %v196 = vpop.f32.mrb[0].mxu0
    %v197 = vadd.f32 %v64, %v196
    %198 = vmatprep.mubr.f32.mxu0 0.0
    %199 = vmatmul.mubr.f32.gmra.mrb[0].mxu0 %v102
    %v200 = vpop.f32.mrb[0].mxu0
    %v201 = vadd.f32 %v69, %v200
    %v202 = vpop.f32.mrb[0].mxu0
    %v203 = vadd.f32 %v69, %v202
    %204 = vmatprep.mubr.f32.mxu0 0.0
    %205 = vmatmul.mubr.f32.gmra.mrb[0].mxu0 %v105
    %v206 = vpop.f32.mrb[0].mxu0
    %v207 = vadd.f32 %v74, %v206
    %v208 = vpop.f32.mrb[0].mxu0
    %v209 = vadd.f32 %v74, %v208
    %210 = vmatprep.mubr.f32.mxu0 0.0
    %211 = vmatmul.mubr.f32.gmra.mrb[0].mxu0 %v108
    %v212 = vpop.f32.mrb[0].mxu0
    %v213 = vadd.f32 %v79, %v212
    %v214 = vpop.f32.mrb[0].mxu0
    %v215 = vadd.f32 %v79, %v214
    %216 = vmatprep.mubr.f32.mxu0 0.0
    %217 = vmatmul.mubr.f32.gmra.mrb[0].mxu0 %v111
    %v218 = vpop.f32.mrb[0].mxu0
    %v219 = vadd.f32 %v84, %v218
    %v220 = vpop.f32.mrb[0].mxu0
    %v221 = vadd.f32 %v84, %v220
    %222 = vmatprep.mubr.f32.mxu0 0.0
    %223 = vmatmul.mubr.f32.gmra.mrb[0].mxu0 %v114
    %v224 = vpop.f32.mrb[0].mxu0
    %v225 = vadd.f32 %v89, %v224
    %v226 = vpop.f32.mrb[0].mxu0
    %v227 = vadd.f32 %v89, %v226
    %228 = vdwg.mxu0
    %v229 = vmax.f32 %v183, 0.0
    %v230 = vmax.f32 %v185, 0.0
    %v231 = vmax.f32 %v189, 0.0
    %v232 = vmax.f32 %v191, 0.0
    %v233 = vmax.f32 %v195, 0.0
    %v234 = vmax.f32 %v197, 0.0
    %v235 = vmax.f32 %v201, 0.0
    %v236 = vmax.f32 %v203, 0.0
    %v237 = vmax.f32 %v207, 0.0
    %v238 = vmax.f32 %v209, 0.0
    %v239 = vmax.f32 %v213, 0.0
    %v240 = vmax.f32 %v215, 0.0
    %v241 = vmax.f32 %v219, 0.0
    %v242 = vmax.f32 %v221, 0.0
    %v243 = vmax.f32 %v225, 0.0
    %v244 = vmax.f32 %v227, 0.0
    %v245 = vld [vmem:[%s3] sm:$0xff]
    %v246 = vld [vmem:[%s3 + $0x8] sm:$0xff]
    %v247 = vld [vmem:[%s3 + $0x10] sm:$0xff]
    %v248 = vld [vmem:[%s3 + $0x18] sm:$0xff]
    %v249 = vld [vmem:[%s4] sm:$0xff]
    %v250 = vld [vmem:[%s4 + $0x8] sm:$0xff]
    %v251 = vld [vmem:[%s4 + $0x10] sm:$0xff]
    %v252 = vld [vmem:[%s4 + $0x18] sm:$0xff]
    %254 = vset.pattern.permute.xlu0 0
    %255 = vperm.xlu0 %254, %v249
    %v256 = vpop.permute.xlu0 %255
    %259 = vset.pattern.permute.xlu0 0
    %260 = vperm.xlu0 %259, %v250
    %v261 = vpop.permute.xlu0 %260
    %264 = vset.pattern.permute.xlu0 0
    %265 = vperm.xlu0 %264, %v251
    %v266 = vpop.permute.xlu0 %265
    %269 = vset.pattern.permute.xlu0 0
    %270 = vperm.xlu0 %269, %v252
    %v271 = vpop.permute.xlu0 %270
    %vm273 = vcmask 523264
    %v275 = vsel %vm273, %v245, 0
    %v278 = vsel %vm273, %v246, 0
    %v281 = vsel %vm273, %v247, 0
    %v284 = vsel %vm273, %v248, 0
    %286 = vmatprep.subr.mxu0 %v230
    %287 = vmatpush1.msra.mxu0 %v229
    %288 = vmatprep.subr.mxu0 %v232
    %289 = vmatpush1.msra.mxu0 %v231
    %290 = vmatprep.subr.mxu0 %v234
    %291 = vmatpush1.msra.mxu0 %v233
    %292 = vmatprep.subr.mxu0 %v236
    %293 = vmatpush1.msra.mxu0 %v235
    %294 = vmatprep.subr.mxu0 %v238
    %295 = vmatpush1.msra.mxu0 %v237
    %296 = vmatprep.subr.mxu0 %v240
    %297 = vmatpush1.msra.mxu0 %v239
    %298 = vmatprep.subr.mxu0 %v242
    %299 = vmatpush1.msra.mxu0 %v241
    %300 = vmatprep.subr.mxu0 %v244
    %301 = vmatpush1.msra.mxu0 %v243
    %302 = vmatprep.subr.mxu0 0.0
    %303 = vmatpush1.msra.mxu0 0.0
    %304 = vmatprep.subr.mxu0 0.0
    %305 = vmatpush1.msra.mxu0 0.0
    %306 = vmatprep.subr.mxu0 0.0
    %307 = vmatpush1.msra.mxu0 0.0
    %308 = vmatprep.subr.mxu0 0.0
    %309 = vmatpush1.msra.mxu0 0.0
    %310 = vmatprep.subr.mxu0 0.0
    %311 = vmatpush1.msra.mxu0 0.0
    %312 = vmatprep.subr.mxu0 0.0
    %313 = vmatpush1.msra.mxu0 0.0
    %314 = vmatprep.subr.mxu0 0.0
    %315 = vmatpush1.msra.mxu0 0.0
    %316 = vmatprep.subr.mxu0 0.0
    %317 = vmatpush1.msra.mxu0 0.0
    %318 = vmatprep.subr.mxu0 0.0
    %319 = vmatpush1.msra.mxu0 0.0
    %320 = vmatprep.subr.mxu0 0.0
    %321 = vmatpush1.msra.mxu0 0.0
    %322 = vmatprep.subr.mxu0 0.0
    %323 = vmatpush1.msra.mxu0 0.0
    %324 = vmatprep.subr.mxu0 0.0
    %325 = vmatpush1.msra.mxu0 0.0
    %326 = vmatprep.subr.mxu0 0.0
    %327 = vmatpush1.msra.mxu0 0.0
    %328 = vmatprep.subr.mxu0 0.0
    %329 = vmatpush1.msra.mxu0 0.0
    %330 = vmatprep.subr.mxu0 0.0
    %331 = vmatpush1.msra.mxu0 0.0
    %332 = vmatprep.subr.mxu0 0.0
    %333 = vmatpush1.msra.mxu0 0.0
    %334 = vmatprep.subr.mxu0 0.0
    %335 = vmatpush1.msra.mxu0 0.0
    %336 = vmatprep.subr.mxu0 0.0
    %337 = vmatpush1.msra.mxu0 0.0
    %338 = vmatprep.subr.mxu0 0.0
    %339 = vmatpush1.msra.mxu0 0.0
    %340 = vmatprep.subr.mxu0 0.0
    %341 = vmatpush1.msra.mxu0 0.0
    %342 = vmatprep.subr.mxu0 0.0
    %343 = vmatpush1.msra.mxu0 0.0
    %344 = vmatprep.subr.mxu0 0.0
    %345 = vmatpush1.msra.mxu0 0.0
    %346 = vmatprep.subr.mxu0 0.0
    %347 = vmatpush1.msra.mxu0 0.0
    %348 = vmatprep.subr.mxu0 0.0
    %349 = vmatpush1.msra.mxu0 0.0
    %350 = vmatprep.mubr.f32.mxu0 0.0
    %351 = vmatmul.mubr.f32.gmra.mrb[0].mxu0 %v275
    %v352 = vpop.f32.mrb[0].mxu0
    %v353 = vadd.f32 %v256, %v352
    %v354 = vpop.f32.mrb[0].mxu0
    %v355 = vadd.f32 %v256, %v354
    %356 = vmatprep.mubr.f32.mxu0 0.0
    %357 = vmatmul.mubr.f32.gmra.mrb[0].mxu0 %v278
    %v358 = vpop.f32.mrb[0].mxu0
    %v359 = vadd.f32 %v261, %v358
    %v360 = vpop.f32.mrb[0].mxu0
    %v361 = vadd.f32 %v261, %v360
    %362 = vmatprep.mubr.f32.mxu0 0.0
    %363 = vmatmul.mubr.f32.gmra.mrb[0].mxu0 %v281
    %v364 = vpop.f32.mrb[0].mxu0
    %v365 = vadd.f32 %v266, %v364
    %v366 = vpop.f32.mrb[0].mxu0
    %v367 = vadd.f32 %v266, %v366
    %368 = vmatprep.mubr.f32.mxu0 0.0
    %369 = vmatmul.mubr.f32.gmra.mrb[0].mxu0 %v284
    %v370 = vpop.f32.mrb[0].mxu0
    %v371 = vadd.f32 %v271, %v370
    %v372 = vpop.f32.mrb[0].mxu0
    %v373 = vadd.f32 %v271, %v372
    %374 = vdwg.mxu0
    %v375 = vmax.f32 %v353, 0.0
    %v376 = vmax.f32 %v355, 0.0
    %v377 = vmax.f32 %v359, 0.0
    %v378 = vmax.f32 %v361, 0.0
    %v379 = vmax.f32 %v365, 0.0
    %v380 = vmax.f32 %v367, 0.0
    %v381 = vmax.f32 %v371, 0.0
    %v382 = vmax.f32 %v373, 0.0
    %v383 = vld [vmem:[%s5] sm:$0xff]
    %v384 = vld [vmem:[%s5 + $0x8] sm:$0xff]
    %v385 = vld [vmem:[%s6] sm:$0xff]
    %v386 = vld [vmem:[%s6 + $0x8] sm:$0xff]
    %388 = vset.pattern.permute.xlu0 0
    %389 = vperm.xlu0 %388, %v385
    %v390 = vpop.permute.xlu0 %389
    %393 = vset.pattern.permute.xlu0 0
    %394 = vperm.xlu0 %393, %v386
    %v395 = vpop.permute.xlu0 %394
    %v398 = vsel %vm91, %v383, 0
    %v401 = vsel %vm91, %v384, 0
    %403 = vmatprep.subr.mxu0 %v376
    %404 = vmatpush1.msra.mxu0 %v375
    %405 = vmatprep.subr.mxu0 %v378
    %406 = vmatpush1.msra.mxu0 %v377
    %407 = vmatprep.subr.mxu0 %v380
    %408 = vmatpush1.msra.mxu0 %v379
    %409 = vmatprep.subr.mxu0 %v382
    %410 = vmatpush1.msra.mxu0 %v381
    %411 = vmatprep.subr.mxu0 0.0
    %412 = vmatpush1.msra.mxu0 0.0
    %413 = vmatprep.subr.mxu0 0.0
    %414 = vmatpush1.msra.mxu0 0.0
    %415 = vmatprep.subr.mxu0 0.0
    %416 = vmatpush1.msra.mxu0 0.0
    %417 = vmatprep.subr.mxu0 0.0
    %418 = vmatpush1.msra.mxu0 0.0
    %419 = vmatprep.subr.mxu0 0.0
    %420 = vmatpush1.msra.mxu0 0.0
    %421 = vmatprep.subr.mxu0 0.0
    %422 = vmatpush1.msra.mxu0 0.0
    %423 = vmatprep.subr.mxu0 0.0
    %424 = vmatpush1.msra.mxu0 0.0
    %425 = vmatprep.subr.mxu0 0.0
    %426 = vmatpush1.msra.mxu0 0.0
    %427 = vmatprep.subr.mxu0 0.0
    %428 = vmatpush1.msra.mxu0 0.0
    %429 = vmatprep.subr.mxu0 0.0
    %430 = vmatpush1.msra.mxu0 0.0
    %431 = vmatprep.subr.mxu0 0.0
    %432 = vmatpush1.msra.mxu0 0.0
    %433 = vmatprep.subr.mxu0 0.0
    %434 = vmatpush1.msra.mxu0 0.0
    %435 = vmatprep.subr.mxu0 0.0
    %436 = vmatpush1.msra.mxu0 0.0
    %437 = vmatprep.subr.mxu0 0.0
    %438 = vmatpush1.msra.mxu0 0.0
    %439 = vmatprep.subr.mxu0 0.0
    %440 = vmatpush1.msra.mxu0 0.0
    %441 = vmatprep.subr.mxu0 0.0
    %442 = vmatpush1.msra.mxu0 0.0
    %443 = vmatprep.subr.mxu0 0.0
    %444 = vmatpush1.msra.mxu0 0.0
    %445 = vmatprep.subr.mxu0 0.0
    %446 = vmatpush1.msra.mxu0 0.0
    %447 = vmatprep.subr.mxu0 0.0
    %448 = vmatpush1.msra.mxu0 0.0
    %449 = vmatprep.subr.mxu0 0.0
    %450 = vmatpush1.msra.mxu0 0.0
    %451 = vmatprep.subr.mxu0 0.0
    %452 = vmatpush1.msra.mxu0 0.0
    %453 = vmatprep.subr.mxu0 0.0
    %454 = vmatpush1.msra.mxu0 0.0
    %455 = vmatprep.subr.mxu0 0.0
    %456 = vmatpush1.msra.mxu0 0.0
    %457 = vmatprep.subr.mxu0 0.0
    %458 = vmatpush1.msra.mxu0 0.0
    %459 = vmatprep.subr.mxu0 0.0
    %460 = vmatpush1.msra.mxu0 0.0
    %461 = vmatprep.subr.mxu0 0.0
    %462 = vmatpush1.msra.mxu0 0.0
    %463 = vmatprep.subr.mxu0 0.0
    %464 = vmatpush1.msra.mxu0 0.0
    %465 = vmatprep.subr.mxu0 0.0
    %466 = vmatpush1.msra.mxu0 0.0
    %467 = vmatprep.mubr.f32.mxu0 0.0
    %468 = vmatmul.mubr.f32.gmra.mrb[0].mxu0 %v398
    %v469 = vpop.f32.mrb[0].mxu0
    %v470 = vadd.f32 %v390, %v469
    %v471 = vpop.f32.mrb[0].mxu0
    %v472 = vadd.f32 %v390, %v471
    %473 = vmatprep.mubr.f32.mxu0 0.0
    %474 = vmatmul.mubr.f32.gmra.mrb[0].mxu0 %v401
    %v475 = vpop.f32.mrb[0].mxu0
    %v476 = vadd.f32 %v395, %v475
    %v477 = vpop.f32.mrb[0].mxu0
    %v478 = vadd.f32 %v395, %v477
    %479 = vdwg.mxu0
    %480 = vst [vmem:[#allocation2] sm:$0xff] %v470
    %481 = vst [vmem:[#allocation2 + $0x8] sm:$0xff] %v472
    %482 = vst [vmem:[#allocation2 + $0x10] sm:$0xff] %v476
    %483 = vst [vmem:[#allocation2 + $0x18] sm:$0xff] %v478
    // Predicated region
    $region30: #{tpu_custom_call.1} parent=1 // pred_check
      _
    $region31: #{tpu_custom_call.1} parent=1 // pred_check_branch
      %485 = sbr.rel (0) target = $region33
    $region32: #{tpu_custom_call.1} parent=1 // pred_region
      %s487 = ssub.s32 512, 512
      %488 = vsyncadd [#allocation3], %s487
      %s489 = sshll.u32 [#allocation2], 4
      %s490 = int_to_ptr.vmem [resolvable:$true] %s489
      %495 = dma.vmem_to_hbm [thread:$0]  %s490, 512, %s7, [#allocation3], 256, 256, 16
    $region33: #{tpu_custom_call.1} parent=1 // pred_fallthru
      _
    // Predicated region
    $region34: #{tpu_custom_call.1} parent=1 // pred_check
      _
    $region35: #{tpu_custom_call.1} parent=1 // pred_check_branch
      %497 = sbr.rel (0) target = $region37
    $region36: #{tpu_custom_call.1} parent=1 // pred_region
      %498 = dma.done [#allocation3], 512
    $region37: #{tpu_custom_call.1} parent=1 // pred_fallthru
      _
    %499 = vsyncpa [#allocation3], 1

</llo_original>
